<compile_context>
chip_gen: v6e
topology: v6e:2x2x1
jax: 0.10.0
libtpu: 0.0.40
codegen_flags: <defaults>
</compile_context>

<pallas_src>
import functools

import jax
import jax.numpy as jnp
from jax.experimental import pallas as pl
from jax.experimental.pallas import tpu as pltpu

LANE = 128
SUBLANE = 8


def _round_up(x: int, m: int) -> int:
    return (x + m - 1) // m * m


def _tpu_config():
    """Generation-aware tiling / VMEM policy."""
    try:
        kind = jax.devices()[0].device_kind.lower()
    except Exception:
        kind = ""
    if "v7" in kind:
        # 64 MiB VMEM per TensorCore, 2 TCs -> make sure >=2 batch tiles.
        return dict(limit_cap=56 << 20, weight_budget=36 << 20,
                    tb_target=1024, want_two_tiles=True)
    if "v6" in kind:
        return dict(limit_cap=110 << 20, weight_budget=76 << 20,
                    tb_target=1024, want_two_tiles=False)
    if "v5" in kind or "v4" in kind:
        return dict(limit_cap=110 << 20, weight_budget=76 << 20,
                    tb_target=512, want_two_tiles=False)
    # Unknown generation: conservative (v7x-like VMEM).
    return dict(limit_cap=56 << 20, weight_budget=36 << 20,
                tb_target=512, want_two_tiles=True)


# --------------------------------------------------------------------------
# One-time weight preparation (pad to lane width + cast to the MXU dtype).
# Call ONCE at init; re-use the result for every forward call.
# --------------------------------------------------------------------------
def prepare_params(params, *, n_blocks, matmul_dtype=jnp.bfloat16):
    N, H, _ = params["w1"].shape
    assert N == n_blocks
    O = params["wout"].shape[1]
    Hp = _round_up(max(H, 1), LANE)
    Op = _round_up(max(O, 1), LANE)
    pH, pO = Hp - H, Op - O
    prep = {
        "w1": jnp.pad(params["w1"], ((0, 0), (0, pH), (0, pH))).astype(matmul_dtype),
        "w2": jnp.pad(params["w2"], ((0, 0), (0, pH), (0, pH))).astype(matmul_dtype),
        "b1": jnp.pad(params["b1"], ((0, 0), (0, pH)))[:, None, :].astype(jnp.float32),
        "b2": jnp.pad(params["b2"], ((0, 0), (0, pH)))[:, None, :].astype(jnp.float32),
        "wout": jnp.pad(params["wout"], ((0, pH), (0, pO))).astype(matmul_dtype),
        "bout": jnp.pad(params["bout"], (0, pO))[None, :].astype(jnp.float32),
    }
    meta = dict(H=H, O=O, Hp=Hp, Op=Op, n_blocks=n_blocks, matmul_dtype=matmul_dtype)
    return prep, meta


# --------------------------------------------------------------------------
# Kernels
# --------------------------------------------------------------------------
def _fused_kernel(x_ref, w1_ref, b1_ref, w2_ref, b2_ref, wout_ref, bout_ref,
                  y_ref, *, n_blocks, residual, matmul_dtype):
    """One batch tile; ALL block weights resident in VMEM; block loop in-kernel.

    x_ref:    [TB, Hp]             f32
    w1_ref:   [N, Hp, Hp]          matmul_dtype (resident)
    b1_ref:   [N, 1, Hp]           f32
    w2_ref:   [N, Hp, Hp]          matmul_dtype (resident)
    b2_ref:   [N, 1, Hp]           f32
    wout_ref: [Hp, Op]             matmul_dtype (resident)
    bout_ref: [1, Op]              f32
    y_ref:    [TB, Op]             f32
    """
    h = x_ref[...].astype(jnp.float32)                      # [TB, Hp] f32 residual stream

    def block(i, h):
        a1 = jnp.dot(h.astype(matmul_dtype), w1_ref[i],
                     preferred_element_type=jnp.float32)
        a1 = jnp.maximum(a1 + b1_ref[i], 0.0)
        a2 = jnp.dot(a1.astype(matmul_dtype), w2_ref[i],
                     preferred_element_type=jnp.float32)
        a2 = jnp.maximum(a2 + b2_ref[i], 0.0)
        return (a2 + h) if residual else a2

    if n_blocks <= 8:                      # small static count: unroll for LLO visibility
        for i in range(n_blocks):
            h = block(i, h)
    else:
        h = jax.lax.fori_loop(0, n_blocks, block, h)

    y = jnp.dot(h.astype(matmul_dtype), wout_ref[...],
                preferred_element_type=jnp.float32)
    y_ref[...] = (y + bout_ref[...]).astype(y_ref.dtype)


def _stream_kernel(x_ref, w1_ref, b1_ref, w2_ref, b2_ref, wout_ref, bout_ref,
                   y_ref, h_ref, *, residual, matmul_dtype):
    """One (batch_tile, block_idx) grid step; per-block weights streamed.

    w1_ref/w2_ref: [1, Hp, Hp]   double-buffered per-block tiles
    h_ref:         [TB, Hp]      f32 VMEM scratch: running residual activation
    """
    i = pl.program_id(1)
    n = pl.num_programs(1)

    @pl.when(i == 0)
    def _():
        h_ref[...] = x_ref[...].astype(jnp.float32)

    h = h_ref[...]
    a1 = jnp.dot(h.astype(matmul_dtype), w1_ref[0],
                 preferred_element_type=jnp.float32)
    a1 = jnp.maximum(a1 + b1_ref[0], 0.0)
    a2 = jnp.dot(a1.astype(matmul_dtype), w2_ref[0],
                 preferred_element_type=jnp.float32)
    a2 = jnp.maximum(a2 + b2_ref[0], 0.0)
    h_new = (a2 + h) if residual else a2
    h_ref[...] = h_new

    @pl.when(i == n - 1)
    def _():
        y = jnp.dot(h_new.astype(matmul_dtype), wout_ref[...],
                    preferred_element_type=jnp.float32)
        y_ref[...] = (y + bout_ref[...]).astype(y_ref.dtype)


# --------------------------------------------------------------------------
# Wrapper
# --------------------------------------------------------------------------
def mlpblock_forward(x, prepared, meta, *, residual=True, batch_tile=None,
                     _force_mode=None):
    """x: [B, H] f32.  prepared/meta: from prepare_params (pad/cast done once)."""
    B = x.shape[0]
    H, O, Hp, Op = meta["H"], meta["O"], meta["Hp"], meta["Op"]
    n_blocks = meta["n_blocks"]
    matmul_dtype = meta["matmul_dtype"]
    assert x.shape[1] == H
    wb = jnp.dtype(matmul_dtype).itemsize
    cfg = _tpu_config()

    # --- mode: weights fully resident (fused) vs streamed per block -------
    # x2: conservative allowance for pipeline buffers on the resident inputs.
    resident_weight_bytes = 2 * ((2 * n_blocks * Hp * Hp + Hp * Op) * wb
                                 + (2 * n_blocks + 1) * Hp * 4 + Op * 4)
    if _force_mode is None:
        fused = resident_weight_bytes <= cfg["weight_budget"]
    else:
        fused = (_force_mode == "fused")

    # --- batch tile (generation-aware, sized against the VMEM budget) -----
    tb_target = cfg["tb_target"] if batch_tile is None else batch_tile
    TB = min(_round_up(tb_target, SUBLANE), _round_up(B, SUBLANE))
    if cfg["want_two_tiles"] and (_round_up(B, SUBLANE) // TB) < 2 and B > SUBLANE:
        TB = _round_up(-(-B // 2), SUBLANE)     # v7x: give both TensorCores a tile

    def est_vmem(tb):
        # In-kernel f32 temporaries (h, casts, a1, a2, h_new) ~5x TB*Hp*4,
        # plus double-buffered x/y tiles and the output temp.
        act = tb * Hp * 4 * (2 + 5) + tb * Op * 4 * (2 + 1)
        if fused:
            return resident_weight_bytes + act
        stream_w = 2 * 2 * Hp * Hp * wb           # w1,w2 double-buffered tiles
        resident_out = 2 * Hp * Op * wb           # wout (x2 allowance)
        scratch = tb * Hp * 4                     # running-h scratch
        small = 4 * 2 * Hp * 4 + 2 * Op * 4       # bias tiles
        return stream_w + resident_out + scratch + act + small

    while TB > SUBLANE and est_vmem(TB) > cfg["limit_cap"]:
        TB = max(SUBLANE, _round_up(TB // 2, SUBLANE))
    # TODO(synk): for very large Hp (>= ~1792 on v7x) even a single (Hp,Hp)
    # weight tile per buffer overflows VMEM; add an inner K-panel tiling
    # (pltpu.emit_pipeline over column/row panels of W1/W2) for that regime.

    vmem_limit = int(min(cfg["limit_cap"], max(4 << 20, int(est_vmem(TB) * 1.25))))

    Bp = _round_up(B, TB)
    n_tiles = Bp // TB
    xp = jnp.pad(x.astype(jnp.float32), ((0, Bp - B), (0, Hp - H)))

    args = (xp, prepared["w1"], prepared["b1"], prepared["w2"], prepared["b2"],
            prepared["wout"], prepared["bout"])

    if fused:
        kernel = functools.partial(_fused_kernel, n_blocks=n_blocks,
                                   residual=residual, matmul_dtype=matmul_dtype)
        yp = pl.pallas_call(
            kernel,
            out_shape=jax.ShapeDtypeStruct((Bp, Op), jnp.float32),
            grid=(n_tiles,),
            in_specs=[
                pl.BlockSpec((TB, Hp), lambda b: (b, 0)),               # x (per batch tile)
                pl.BlockSpec((n_blocks, Hp, Hp), lambda b: (0, 0, 0)),  # w1 (resident)
                pl.BlockSpec((n_blocks, 1, Hp), lambda b: (0, 0, 0)),   # b1
                pl.BlockSpec((n_blocks, Hp, Hp), lambda b: (0, 0, 0)),  # w2 (resident)
                pl.BlockSpec((n_blocks, 1, Hp), lambda b: (0, 0, 0)),   # b2
                pl.BlockSpec((Hp, Op), lambda b: (0, 0)),               # wout (resident)
                pl.BlockSpec((1, Op), lambda b: (0, 0)),                # bout
            ],
            out_specs=pl.BlockSpec((TB, Op), lambda b: (b, 0)),
            compiler_params=pltpu.CompilerParams(
                dimension_semantics=("parallel",),
                vmem_limit_bytes=vmem_limit,
            ),
        )(*args)
    else:
        kernel = functools.partial(_stream_kernel, residual=residual,
                                   matmul_dtype=matmul_dtype)
        yp = pl.pallas_call(
            kernel,
            out_shape=jax.ShapeDtypeStruct((Bp, Op), jnp.float32),
            grid=(n_tiles, n_blocks),
            in_specs=[
                pl.BlockSpec((TB, Hp), lambda b, i: (b, 0)),        # x (per batch tile)
                pl.BlockSpec((1, Hp, Hp), lambda b, i: (i, 0, 0)),  # w1 (streamed per block)
                pl.BlockSpec((1, 1, Hp), lambda b, i: (i, 0, 0)),   # b1
                pl.BlockSpec((1, Hp, Hp), lambda b, i: (i, 0, 0)),  # w2 (streamed per block)
                pl.BlockSpec((1, 1, Hp), lambda b, i: (i, 0, 0)),   # b2
                pl.BlockSpec((Hp, Op), lambda b, i: (0, 0)),        # wout (resident)
                pl.BlockSpec((1, Op), lambda b, i: (0, 0)),         # bout
            ],
            out_specs=pl.BlockSpec((TB, Op), lambda b, i: (b, 0)),
            scratch_shapes=[pltpu.VMEM((TB, Hp), jnp.float32)],     # running h
            compiler_params=pltpu.CompilerParams(
                dimension_semantics=("parallel", "arbitrary"),
                vmem_limit_bytes=vmem_limit,
            ),
        )(*args)
        # TODO(synk): on VMEM-tight v7x configs, move the wout projection to a
        # separate small matmul so wout does not stay resident for all blocks.

    return yp[:B, :O]


# --------------------------------------------------------------------------
# Reference + init (logical, unpadded params; nn.Linear-style uniform init)
# --------------------------------------------------------------------------
def init_params(key, h_dim, out_dim, n_blocks):
    """Weights stored pre-transposed as [in_dim, out_dim] so kernels do h @ W + b."""
    def linear(k, fan_in, fan_out):
        k1, k2 = jax.random.split(k)
        bound = 1.0 / jnp.sqrt(fan_in)
        w = jax.random.uniform(k1, (fan_in, fan_out), jnp.float32, -bound, bound)
        b = jax.random.uniform(k2, (fan_out,), jnp.float32, -bound, bound)
        return w, b

    keys = jax.random.split(key, 2 * n_blocks + 1)
    w1s, b1s, w2s, b2s = [], [], [], []
    for i in range(n_blocks):
        w1, b1 = linear(keys[2 * i], h_dim, h_dim)
        w2, b2 = linear(keys[2 * i + 1], h_dim, h_dim)
        w1s.append(w1); b1s.append(b1); w2s.append(w2); b2s.append(b2)
    wout, bout = linear(keys[-1], h_dim, out_dim)
    return {
        "w1": jnp.stack(w1s), "b1": jnp.stack(b1s),
        "w2": jnp.stack(w2s), "b2": jnp.stack(b2s),
        "wout": wout, "bout": bout,
    }


def mlpblock_ref(x, params, *, n_blocks, residual=True):
    h = x
    for i in range(n_blocks):
        r = h if residual else 0.0
        a1 = jnp.maximum(h @ params["w1"][i] + params["b1"][i], 0.0)
        a2 = jnp.maximum(a1 @ params["w2"][i] + params["b2"][i], 0.0)
        h = a2 + r
    return h @ params["wout"] + params["bout"]


if __name__ == "__main__":
    B, H, OUT, N_BLOCKS = 8, 32, 16, 2

    key = jax.random.PRNGKey(0)
    kx, kp = jax.random.split(key)
    x = jax.random.normal(kx, (B, H), jnp.float32)
    params = init_params(kp, H, OUT, N_BLOCKS)

    y_ref = mlpblock_ref(x, params, n_blocks=N_BLOCKS, residual=True)

    # Weight prep (pad + cast) happens ONCE here, not on every forward call.
    prep_f32, meta_f32 = prepare_params(params, n_blocks=N_BLOCKS,
                                        matmul_dtype=jnp.float32)
    prep_bf16, meta_bf16 = prepare_params(params, n_blocks=N_BLOCKS,
                                          matmul_dtype=jnp.bfloat16)

    # Fused (weights-resident) path, f32 matmuls: tight numerical check.
    y_f32 = jax.block_until_ready(mlpblock_forward(x, prep_f32, meta_f32))
    assert y_f32.shape == (B, OUT)
    assert jnp.allclose(y_f32, y_ref, atol=1e-4, rtol=1e-4), "fused f32 mismatch"

    # Fused path, bf16 MXU matmuls (production default): looser tolerance.
    y_bf16 = jax.block_until_ready(mlpblock_forward(x, prep_bf16, meta_bf16))
    assert y_bf16.shape == (B, OUT)
    assert jnp.allclose(y_bf16, y_ref, atol=1e-1, rtol=1e-1), "fused bf16 mismatch"

    # Streaming path (taken by large models) — exercised explicitly so both
    # kernels are compile- and correctness-checked.
    y_stream = jax.block_until_ready(
        mlpblock_forward(x, prep_f32, meta_f32, _force_mode="stream"))
    assert y_stream.shape == (B, OUT)
    assert jnp.allclose(y_stream, y_ref, atol=1e-4, rtol=1e-4), "stream mismatch"

    print("KERNEL_OK")
</pallas_src>

<mosaic_0001>
module attributes {stable_mosaic.version = 11 : i64} {
  func.func @_fused_kernel(%arg0: i32, %arg1: memref<8x128xf32, #tpu.memory_space<vmem>>, %arg2: memref<2x128x128xf32, #tpu.memory_space<vmem>>, %arg3: memref<2x1x128xf32, #tpu.memory_space<vmem>>, %arg4: memref<2x128x128xf32, #tpu.memory_space<vmem>>, %arg5: memref<2x1x128xf32, #tpu.memory_space<vmem>>, %arg6: memref<128x128xf32, #tpu.memory_space<vmem>>, %arg7: memref<1x128xf32, #tpu.memory_space<vmem>>, %arg8: memref<8x128xf32, #tpu.memory_space<vmem>>) attributes {dimension_semantics = [#tpu.dimension_semantics<parallel>], iteration_bounds = array<i64: 1>, scalar_prefetch = 0 : i64, scratch_operands = 0 : i64, tpu.core_type = #tpu.core_type<tc>, window_params = [{transform_indices = @transform_0, window_bounds = array<i64: 8, 128>}, {pipeline_mode = #tpu.pipeline_mode<synchronous>, transform_indices = @transform_1, window_bounds = array<i64: 2, 128, 128>}, {pipeline_mode = #tpu.pipeline_mode<synchronous>, transform_indices = @transform_2, window_bounds = array<i64: 2, 1, 128>}, {pipeline_mode = #tpu.pipeline_mode<synchronous>, transform_indices = @transform_3, window_bounds = array<i64: 2, 128, 128>}, {pipeline_mode = #tpu.pipeline_mode<synchronous>, transform_indices = @transform_4, window_bounds = array<i64: 2, 1, 128>}, {pipeline_mode = #tpu.pipeline_mode<synchronous>, transform_indices = @transform_5, window_bounds = array<i64: 128, 128>}, {pipeline_mode = #tpu.pipeline_mode<synchronous>, transform_indices = @transform_6, window_bounds = array<i64: 1, 128>}, {transform_indices = @transform_7, window_bounds = array<i64: 8, 128>}]} {
    %c0 = arith.constant 0 : index
    %c0_0 = arith.constant 0 : index
    %0 = vector.load %arg1[%c0, %c0_0] : memref<8x128xf32, #tpu.memory_space<vmem>>, vector<8x128xf32>
    %c0_1 = arith.constant 0 : index
    %c0_2 = arith.constant 0 : index
    %c0_3 = arith.constant 0 : index
    %1 = vector.load %arg2[%c0_1, %c0_2, %c0_3] : memref<2x128x128xf32, #tpu.memory_space<vmem>>, vector<1x128x128xf32>
    %2 = vector.shape_cast %1 : vector<1x128x128xf32> to vector<128x128xf32>
    %cst = arith.constant dense<0.000000e+00> : vector<8x128xf32>
    %3 = tpu.matmul %0, %2, %cst {dimension_numbers = #tpu.dot_dimension_numbers<[1], [0], [0], [1], [0, 0, 1, 1], [], []>} : vector<8x128xf32>, vector<128x128xf32>, vector<8x128xf32> -> vector<8x128xf32>
    %c0_4 = arith.constant 0 : index
    %c0_5 = arith.constant 0 : index
    %c0_6 = arith.constant 0 : index
    %4 = vector.load %arg3[%c0_4, %c0_5, %c0_6] : memref<2x1x128xf32, #tpu.memory_space<vmem>>, vector<1x1x128xf32>
    %5 = vector.shape_cast %4 : vector<1x1x128xf32> to vector<1x128xf32>
    %6 = vector.broadcast %5 : vector<1x128xf32> to vector<8x128xf32>
    %7 = arith.addf %3, %6 : vector<8x128xf32>
    %cst_7 = arith.constant 0.000000e+00 : f32
    %8 = vector.broadcast %cst_7 : f32 to vector<8x128xf32>
    %9 = arith.maximumf %7, %8 : vector<8x128xf32>
    %c0_8 = arith.constant 0 : index
    %c0_9 = arith.constant 0 : index
    %c0_10 = arith.constant 0 : index
    %10 = vector.load %arg4[%c0_8, %c0_9, %c0_10] : memref<2x128x128xf32, #tpu.memory_space<vmem>>, vector<1x128x128xf32>
    %11 = vector.shape_cast %10 : vector<1x128x128xf32> to vector<128x128xf32>
    %cst_11 = arith.constant dense<0.000000e+00> : vector<8x128xf32>
    %12 = tpu.matmul %9, %11, %cst_11 {dimension_numbers = #tpu.dot_dimension_numbers<[1], [0], [0], [1], [0, 0, 1, 1], [], []>} : vector<8x128xf32>, vector<128x128xf32>, vector<8x128xf32> -> vector<8x128xf32>
    %c0_12 = arith.constant 0 : index
    %c0_13 = arith.constant 0 : index
    %c0_14 = arith.constant 0 : index
    %13 = vector.load %arg5[%c0_12, %c0_13, %c0_14] : memref<2x1x128xf32, #tpu.memory_space<vmem>>, vector<1x1x128xf32>
    %14 = vector.shape_cast %13 : vector<1x1x128xf32> to vector<1x128xf32>
    %15 = vector.broadcast %14 : vector<1x128xf32> to vector<8x128xf32>
    %16 = arith.addf %12, %15 : vector<8x128xf32>
    %cst_15 = arith.constant 0.000000e+00 : f32
    %17 = vector.broadcast %cst_15 : f32 to vector<8x128xf32>
    %18 = arith.maximumf %16, %17 : vector<8x128xf32>
    %19 = arith.addf %18, %0 : vector<8x128xf32>
    %c1 = arith.constant 1 : index
    %c0_16 = arith.constant 0 : index
    %c0_17 = arith.constant 0 : index
    %20 = vector.load %arg2[%c1, %c0_16, %c0_17] : memref<2x128x128xf32, #tpu.memory_space<vmem>>, vector<1x128x128xf32>
    %21 = vector.shape_cast %20 : vector<1x128x128xf32> to vector<128x128xf32>
    %cst_18 = arith.constant dense<0.000000e+00> : vector<8x128xf32>
    %22 = tpu.matmul %19, %21, %cst_18 {dimension_numbers = #tpu.dot_dimension_numbers<[1], [0], [0], [1], [0, 0, 1, 1], [], []>} : vector<8x128xf32>, vector<128x128xf32>, vector<8x128xf32> -> vector<8x128xf32>
    %c1_19 = arith.constant 1 : index
    %c0_20 = arith.constant 0 : index
    %c0_21 = arith.constant 0 : index
    %23 = vector.load %arg3[%c1_19, %c0_20, %c0_21] : memref<2x1x128xf32, #tpu.memory_space<vmem>>, vector<1x1x128xf32>
    %24 = vector.shape_cast %23 : vector<1x1x128xf32> to vector<1x128xf32>
    %25 = vector.broadcast %24 : vector<1x128xf32> to vector<8x128xf32>
    %26 = arith.addf %22, %25 : vector<8x128xf32>
    %cst_22 = arith.constant 0.000000e+00 : f32
    %27 = vector.broadcast %cst_22 : f32 to vector<8x128xf32>
    %28 = arith.maximumf %26, %27 : vector<8x128xf32>
    %c1_23 = arith.constant 1 : index
    %c0_24 = arith.constant 0 : index
    %c0_25 = arith.constant 0 : index
    %29 = vector.load %arg4[%c1_23, %c0_24, %c0_25] : memref<2x128x128xf32, #tpu.memory_space<vmem>>, vector<1x128x128xf32>
    %30 = vector.shape_cast %29 : vector<1x128x128xf32> to vector<128x128xf32>
    %cst_26 = arith.constant dense<0.000000e+00> : vector<8x128xf32>
    %31 = tpu.matmul %28, %30, %cst_26 {dimension_numbers = #tpu.dot_dimension_numbers<[1], [0], [0], [1], [0, 0, 1, 1], [], []>} : vector<8x128xf32>, vector<128x128xf32>, vector<8x128xf32> -> vector<8x128xf32>
    %c1_27 = arith.constant 1 : index
    %c0_28 = arith.constant 0 : index
    %c0_29 = arith.constant 0 : index
    %32 = vector.load %arg5[%c1_27, %c0_28, %c0_29] : memref<2x1x128xf32, #tpu.memory_space<vmem>>, vector<1x1x128xf32>
    %33 = vector.shape_cast %32 : vector<1x1x128xf32> to vector<1x128xf32>
    %34 = vector.broadcast %33 : vector<1x128xf32> to vector<8x128xf32>
    %35 = arith.addf %31, %34 : vector<8x128xf32>
    %cst_30 = arith.constant 0.000000e+00 : f32
    %36 = vector.broadcast %cst_30 : f32 to vector<8x128xf32>
    %37 = arith.maximumf %35, %36 : vector<8x128xf32>
    %38 = arith.addf %37, %19 : vector<8x128xf32>
    %c0_31 = arith.constant 0 : index
    %c0_32 = arith.constant 0 : index
    %39 = vector.load %arg6[%c0_31, %c0_32] : memref<128x128xf32, #tpu.memory_space<vmem>>, vector<128x128xf32>
    %cst_33 = arith.constant dense<0.000000e+00> : vector<8x128xf32>
    %40 = tpu.matmul %38, %39, %cst_33 {dimension_numbers = #tpu.dot_dimension_numbers<[1], [0], [0], [1], [0, 0, 1, 1], [], []>} : vector<8x128xf32>, vector<128x128xf32>, vector<8x128xf32> -> vector<8x128xf32>
    %c0_34 = arith.constant 0 : index
    %c0_35 = arith.constant 0 : index
    %41 = vector.load %arg7[%c0_34, %c0_35] : memref<1x128xf32, #tpu.memory_space<vmem>>, vector<1x128xf32>
    %42 = vector.broadcast %41 : vector<1x128xf32> to vector<8x128xf32>
    %43 = arith.addf %40, %42 : vector<8x128xf32>
    %c0_36 = arith.constant 0 : index
    %c0_37 = arith.constant 0 : index
    %44 = vector.load %arg8[%c0_36, %c0_37] : memref<8x128xf32, #tpu.memory_space<vmem>>, vector<8x128xf32>
    tpu.vector_store %arg8[%c0_36, %c0_37], %43 {strides = array<i32>} : memref<8x128xf32, #tpu.memory_space<vmem>>, vector<8x128xf32>,
    return
  }
  func.func @transform_0(%arg0: i32) -> (i32, i32) {
    %c0_i32 = arith.constant 0 : i32
    %c0_i32_0 = arith.constant 0 : i32
    return %arg0, %c0_i32 : i32, i32
  }
  func.func @transform_1(%arg0: i32) -> (i32, i32, i32) {
    %c0_i32 = arith.constant 0 : i32
    %c0_i32_0 = arith.constant 0 : i32
    %c0_i32_1 = arith.constant 0 : i32
    %c0_i32_2 = arith.constant 0 : i32
    return %c0_i32, %c0_i32_0, %c0_i32_1 : i32, i32, i32
  }
  func.func @transform_2(%arg0: i32) -> (i32, i32, i32) {
    %c0_i32 = arith.constant 0 : i32
    %c0_i32_0 = arith.constant 0 : i32
    %c0_i32_1 = arith.constant 0 : i32
    %c0_i32_2 = arith.constant 0 : i32
    return %c0_i32, %c0_i32_0, %c0_i32_1 : i32, i32, i32
  }
  func.func @transform_3(%arg0: i32) -> (i32, i32, i32) {
    %c0_i32 = arith.constant 0 : i32
    %c0_i32_0 = arith.constant 0 : i32
    %c0_i32_1 = arith.constant 0 : i32
    %c0_i32_2 = arith.constant 0 : i32
    return %c0_i32, %c0_i32_0, %c0_i32_1 : i32, i32, i32
  }
  func.func @transform_4(%arg0: i32) -> (i32, i32, i32) {
    %c0_i32 = arith.constant 0 : i32
    %c0_i32_0 = arith.constant 0 : i32
    %c0_i32_1 = arith.constant 0 : i32
    %c0_i32_2 = arith.constant 0 : i32
    return %c0_i32, %c0_i32_0, %c0_i32_1 : i32, i32, i32
  }
  func.func @transform_5(%arg0: i32) -> (i32, i32) {
    %c0_i32 = arith.constant 0 : i32
    %c0_i32_0 = arith.constant 0 : i32
    %c0_i32_1 = arith.constant 0 : i32
    return %c0_i32, %c0_i32_0 : i32, i32
  }
  func.func @transform_6(%arg0: i32) -> (i32, i32) {
    %c0_i32 = arith.constant 0 : i32
    %c0_i32_0 = arith.constant 0 : i32
    %c0_i32_1 = arith.constant 0 : i32
    return %c0_i32, %c0_i32_0 : i32, i32
  }
  func.func @transform_7(%arg0: i32) -> (i32, i32) {
    %c0_i32 = arith.constant 0 : i32
    %c0_i32_0 = arith.constant 0 : i32
    return %arg0, %c0_i32 : i32, i32
  }
}

</mosaic_0001>

<llo_original>
// kernel: tpu_custom_call.1
$region0: #{tpu_custom_call.1}
  #allocation0 [shape = 'u32[]', space=smem, size = 0x4, offset = 0x4, fixed_abs, tag = 'smem constant byte address 0x4 - core index']
  #allocation1 [shape = 'u32[144,128]{1,0:T(1,128)}', space=vmem, size = 0x12000, scoped, tag = 'internal scratch']
  %s0 = inlined_call_operand.hbm [shape: f32[8,128], index: 0, kind: input, shape index: {}]
  %s1 = inlined_call_operand.hbm [shape: f32[2,128,128], index: 1, kind: input, shape index: {}]
  %s2 = inlined_call_operand.vmem [shape: f32[2,1,128], index: 2, kind: input, shape index: {}]
  %s3 = inlined_call_operand.hbm [shape: f32[2,128,128], index: 3, kind: input, shape index: {}]
  %s4 = inlined_call_operand.vmem [shape: f32[2,1,128], index: 4, kind: input, shape index: {}]
  %s5 = inlined_call_operand.hbm [shape: f32[128,128], index: 5, kind: input, shape index: {}]
  %s6 = inlined_call_operand.vmem [shape: f32[1,128], index: 6, kind: input, shape index: {}]
  %s7 = inlined_call_operand.hbm [shape: f32[8,128], index: 7, kind: output, shape index: {}]
  %s8 = sld [smem:[#allocation0]]
  $region54: #{tpu_custom_call.1} parent=0
    _
  %s10 = ssub.s32 1, %s8
  %s11 = scalar_select 0, %s10, %s8
  $region1: #{tpu_custom_call.1} parent=0
    #allocation2 [shape = 'u8[4096]{0}', space=vmem, size = 0x1000, scoped, tag = 'input window, operand 0, single buffered']
    #allocation3 [shape = 's32[1]{0}', space=sflag, size = 0x4, scoped, tag = 'scoped memory for tpu_custom_call.1']
    #allocation4 [shape = 's32[1]{0}', space=sflag, size = 0x4, scoped, tag = 'scoped memory for tpu_custom_call.1']
    #allocation5 [shape = 'u8[131072]{0}', space=vmem, size = 0x20000, scoped, tag = 'input window, operand 1, single buffered']
    #allocation6 [shape = 's32[1]{0}', space=sflag, size = 0x4, scoped, tag = 'scoped memory for tpu_custom_call.1']
    #allocation7 [shape = 'u8[131072]{0}', space=vmem, size = 0x20000, scoped, tag = 'input window, operand 3, single buffered']
    #allocation8 [shape = 'u8[65536]{0}', space=vmem, size = 0x10000, scoped, tag = 'input window, operand 5, single buffered']
    #allocation9 [shape = 's32[1]{0}', space=sflag, size = 0x4, scoped, tag = 'scoped memory for tpu_custom_call.1']
    #allocation10 [shape = 'u8[4096]{0}', space=vmem, size = 0x1000, scoped, tag = 'output window, operand 0, single buffered']
    %12 = vsyncpa [#allocation3], 0
    %13 = vsyncpa [#allocation6], 0
    %14 = vsyncpa [#allocation9], 0
    %15 = vsyncpa [#allocation4], 0
    // Predicated region
    $region2: #{tpu_custom_call.1} parent=1 // pred_check
      _
    $region3: #{tpu_custom_call.1} parent=1 // pred_check_branch
      %17 = sbr.rel (0) target = $region5
    $region4: #{tpu_custom_call.1} parent=1 // pred_region
      %s19 = ssub.s32 128, 128
      %20 = vsyncadd [#allocation3], %s19
      %s22 = sshll.u32 [#allocation2], 4
      %s23 = int_to_ptr.vmem [resolvable:$true] %s22
      %25 = dma.hbm_to_vmem [thread:$0]  %s0, 128, %s23, [#allocation3]
    $region5: #{tpu_custom_call.1} parent=1 // pred_fallthru
      _
    // Predicated region
    $region6: #{tpu_custom_call.1} parent=1 // pred_check
      _
    $region7: #{tpu_custom_call.1} parent=1 // pred_check_branch
      %27 = sbr.rel (0) target = $region9
    $region8: #{tpu_custom_call.1} parent=1 // pred_region
      %s29 = ssub.s32 4096, 4096
      %30 = vsyncadd [#allocation6], %s29
      %s31 = sshll.u32 [#allocation5], 4
      %s32 = int_to_ptr.vmem [resolvable:$true] %s31
      %37 = dma.hbm_to_vmem [thread:$0]  %s1, 4096, %s32, [#allocation6], 128, 128, 8
    $region9: #{tpu_custom_call.1} parent=1 // pred_fallthru
      _
    // Predicated region
    $region10: #{tpu_custom_call.1} parent=1 // pred_check
      _
    $region11: #{tpu_custom_call.1} parent=1 // pred_check_branch
      %39 = sbr.rel (0) target = $region13
    $region12: #{tpu_custom_call.1} parent=1 // pred_region
      _
    $region13: #{tpu_custom_call.1} parent=1 // pred_fallthru
      _
    // Predicated region
    $region14: #{tpu_custom_call.1} parent=1 // pred_check
      _
    $region15: #{tpu_custom_call.1} parent=1 // pred_check_branch
      %41 = sbr.rel (0) target = $region17
    $region16: #{tpu_custom_call.1} parent=1 // pred_region
      %s43 = ssub.s32 4096, 4096
      %44 = vsyncadd [#allocation6], %s43
      %s45 = sshll.u32 [#allocation7], 4
      %s46 = int_to_ptr.vmem [resolvable:$true] %s45
      %51 = dma.hbm_to_vmem [thread:$0]  %s3, 4096, %s46, [#allocation6], 128, 128, 8
    $region17: #{tpu_custom_call.1} parent=1 // pred_fallthru
      _
    // Predicated region
    $region18: #{tpu_custom_call.1} parent=1 // pred_check
      _
    $region19: #{tpu_custom_call.1} parent=1 // pred_check_branch
      %53 = sbr.rel (0) target = $region21
    $region20: #{tpu_custom_call.1} parent=1 // pred_region
      _
    $region21: #{tpu_custom_call.1} parent=1 // pred_fallthru
      _
    // Predicated region
    $region22: #{tpu_custom_call.1} parent=1 // pred_check
      _
    $region23: #{tpu_custom_call.1} parent=1 // pred_check_branch
      %55 = sbr.rel (0) target = $region25
    $region24: #{tpu_custom_call.1} parent=1 // pred_region
      %s57 = ssub.s32 2048, 2048
      %58 = vsyncadd [#allocation9], %s57
      %s59 = sshll.u32 [#allocation8], 4
      %s60 = int_to_ptr.vmem [resolvable:$true] %s59
      %65 = dma.hbm_to_vmem [thread:$0]  %s5, 2048, %s60, [#allocation9], 128, 128, 8
    $region25: #{tpu_custom_call.1} parent=1 // pred_fallthru
      _
    // Predicated region
    $region26: #{tpu_custom_call.1} parent=1 // pred_check
      _
    $region27: #{tpu_custom_call.1} parent=1 // pred_check_branch
      %67 = sbr.rel (0) target = $region29
    $region28: #{tpu_custom_call.1} parent=1 // pred_region
      _
    $region29: #{tpu_custom_call.1} parent=1 // pred_fallthru
      _
    // Predicated region
    $region30: #{tpu_custom_call.1} parent=1 // pred_check
      _
    $region31: #{tpu_custom_call.1} parent=1 // pred_check_branch
      %69 = sbr.rel (0) target = $region33
    $region32: #{tpu_custom_call.1} parent=1 // pred_region
      %70 = dma.done [#allocation3], 128
    $region33: #{tpu_custom_call.1} parent=1 // pred_fallthru
      _
    // Predicated region
    $region34: #{tpu_custom_call.1} parent=1 // pred_check
      _
    $region35: #{tpu_custom_call.1} parent=1 // pred_check_branch
      %72 = sbr.rel (0) target = $region37
    $region36: #{tpu_custom_call.1} parent=1 // pred_region
      %73 = dma.done [#allocation6], 4096
    $region37: #{tpu_custom_call.1} parent=1 // pred_fallthru
      _
    // Predicated region
    $region38: #{tpu_custom_call.1} parent=1 // pred_check
      _
    $region39: #{tpu_custom_call.1} parent=1 // pred_check_branch
      %75 = sbr.rel (0) target = $region41
    $region40: #{tpu_custom_call.1} parent=1 // pred_region
      %76 = dma.done [#allocation6], 4096
    $region41: #{tpu_custom_call.1} parent=1 // pred_fallthru
      _
    // Predicated region
    $region42: #{tpu_custom_call.1} parent=1 // pred_check
      _
    $region43: #{tpu_custom_call.1} parent=1 // pred_check_branch
      %78 = sbr.rel (0) target = $region45
    $region44: #{tpu_custom_call.1} parent=1 // pred_region
      %79 = dma.done [#allocation9], 2048
    $region45: #{tpu_custom_call.1} parent=1 // pred_fallthru
      _
    %v80 = vld [vmem:[#allocation2] sm:$0xff]
    %v81 = vld [vmem:[#allocation5] sm:$0xff]
    %v82 = vld [vmem:[#allocation5 + $0x8] sm:$0xff]
    %v83 = vld [vmem:[#allocation5 + $0x10] sm:$0xff]
    %v84 = vld [vmem:[#allocation5 + $0x18] sm:$0xff]
    %v85 = vld [vmem:[#allocation5 + $0x20] sm:$0xff]
    %v86 = vld [vmem:[#allocation5 + $0x28] sm:$0xff]
    %v87 = vld [vmem:[#allocation5 + $0x30] sm:$0xff]
    %v88 = vld [vmem:[#allocation5 + $0x38] sm:$0xff]
    %v89 = vld [vmem:[#allocation5 + $0x40] sm:$0xff]
    %v90 = vld [vmem:[#allocation5 + $0x48] sm:$0xff]
    %v91 = vld [vmem:[#allocation5 + $0x50] sm:$0xff]
    %v92 = vld [vmem:[#allocation5 + $0x58] sm:$0xff]
    %v93 = vld [vmem:[#allocation5 + $0x60] sm:$0xff]
    %v94 = vld [vmem:[#allocation5 + $0x68] sm:$0xff]
    %v95 = vld [vmem:[#allocation5 + $0x70] sm:$0xff]
    %v96 = vld [vmem:[#allocation5 + $0x78] sm:$0xff]
    %v97 = vld [vmem:[%s2] sm:$0x1]
    %v99 = vlaneseq
    %v100 = vshrl.u32 %v99, 7
    %v101 = vsub.s32 0, %v100
    %v102 = vrot.slane %v97, %v101
    %104 = vmatprep.subr.mxu0 0.0
    %105 = vmatpush1.msra.mxu0 %v96
    %106 = vmatprep.subr.mxu0 0.0
    %107 = vmatpush1.msra.mxu0 %v95
    %108 = vmatprep.subr.mxu0 0.0
    %109 = vmatpush1.msra.mxu0 %v94
    %110 = vmatprep.subr.mxu0 0.0
    %111 = vmatpush1.msra.mxu0 %v93
    %112 = vmatprep.subr.mxu0 0.0
    %113 = vmatpush1.msra.mxu0 %v92
    %114 = vmatprep.subr.mxu0 0.0
    %115 = vmatpush1.msra.mxu0 %v91
    %116 = vmatprep.subr.mxu0 0.0
    %117 = vmatpush1.msra.mxu0 %v90
    %118 = vmatprep.subr.mxu0 0.0
    %119 = vmatpush1.msra.mxu0 %v89
    %120 = vmatprep.subr.mxu0 0.0
    %121 = vmatpush1.msra.mxu0 %v88
    %122 = vmatprep.subr.mxu0 0.0
    %123 = vmatpush1.msra.mxu0 %v87
    %124 = vmatprep.subr.mxu0 0.0
    %125 = vmatpush1.msra.mxu0 %v86
    %126 = vmatprep.subr.mxu0 0.0
    %127 = vmatpush1.msra.mxu0 %v85
    %128 = vmatprep.subr.mxu0 0.0
    %129 = vmatpush1.msra.mxu0 %v84
    %130 = vmatprep.subr.mxu0 0.0
    %131 = vmatpush1.msra.mxu0 %v83
    %132 = vmatprep.subr.mxu0 0.0
    %133 = vmatpush1.msra.mxu0 %v82
    %134 = vmatprep.subr.mxu0 0.0
    %135 = vmatpush1.msra.mxu0 %v81
    %136 = vmatprep.subr.mxu0 0.0
    %137 = vmatpush2.msra.mxu0 0.0
    %138 = vmatprep.subr.mxu0 0.0
    %139 = vmatpush2.msra.mxu0 0.0
    %140 = vmatprep.subr.mxu0 0.0
    %141 = vmatpush2.msra.mxu0 0.0
    %142 = vmatprep.subr.mxu0 0.0
    %143 = vmatpush2.msra.mxu0 0.0
    %144 = vmatprep.subr.mxu0 0.0
    %145 = vmatpush2.msra.mxu0 0.0
    %146 = vmatprep.subr.mxu0 0.0
    %147 = vmatpush2.msra.mxu0 0.0
    %148 = vmatprep.subr.mxu0 0.0
    %149 = vmatpush2.msra.mxu0 0.0
    %150 = vmatprep.subr.mxu0 0.0
    %151 = vmatpush2.msra.mxu0 0.0
    %152 = vmatprep.subr.mxu0 0.0
    %153 = vmatpush2.msra.mxu0 0.0
    %154 = vmatprep.subr.mxu0 0.0
    %155 = vmatpush2.msra.mxu0 0.0
    %156 = vmatprep.subr.mxu0 0.0
    %157 = vmatpush2.msra.mxu0 0.0
    %158 = vmatprep.subr.mxu0 0.0
    %159 = vmatpush2.msra.mxu0 0.0
    %160 = vmatprep.subr.mxu0 0.0
    %161 = vmatpush2.msra.mxu0 0.0
    %162 = vmatprep.subr.mxu0 0.0
    %163 = vmatpush2.msra.mxu0 0.0
    %164 = vmatprep.subr.mxu0 0.0
    %165 = vmatpush2.msra.mxu0 0.0
    %166 = vmatprep.subr.mxu0 0.0
    %167 = vmatpush2.msra.mxu0 0.0
    %168 = vmatprep.mubr.f32.mxu0 0.0
    %169 = vmatmul.mubr.f32.gmra.mxu0 %v80
    %v170 = vpop.f32.mrf.mxu0
    %v171 = vadd.f32 %v102, %v170
    %v172 = vpop.f32.mrf.mxu0
    %173 = vdwg.mxu0
    %v174 = vmax.f32 %v171, 0.0
    %v175 = vld [vmem:[#allocation7] sm:$0xff]
    %v176 = vld [vmem:[#allocation7 + $0x8] sm:$0xff]
    %v177 = vld [vmem:[#allocation7 + $0x10] sm:$0xff]
    %v178 = vld [vmem:[#allocation7 + $0x18] sm:$0xff]
    %v179 = vld [vmem:[#allocation7 + $0x20] sm:$0xff]
    %v180 = vld [vmem:[#allocation7 + $0x28] sm:$0xff]
    %v181 = vld [vmem:[#allocation7 + $0x30] sm:$0xff]
    %v182 = vld [vmem:[#allocation7 + $0x38] sm:$0xff]
    %v183 = vld [vmem:[#allocation7 + $0x40] sm:$0xff]
    %v184 = vld [vmem:[#allocation7 + $0x48] sm:$0xff]
    %v185 = vld [vmem:[#allocation7 + $0x50] sm:$0xff]
    %v186 = vld [vmem:[#allocation7 + $0x58] sm:$0xff]
    %v187 = vld [vmem:[#allocation7 + $0x60] sm:$0xff]
    %v188 = vld [vmem:[#allocation7 + $0x68] sm:$0xff]
    %v189 = vld [vmem:[#allocation7 + $0x70] sm:$0xff]
    %v190 = vld [vmem:[#allocation7 + $0x78] sm:$0xff]
    %v191 = vld [vmem:[%s4] sm:$0x1]
    %v193 = vlaneseq
    %v194 = vshrl.u32 %v193, 7
    %v195 = vsub.s32 0, %v194
    %v196 = vrot.slane %v191, %v195
    %198 = vmatprep.subr.mxu0 0.0
    %199 = vmatpush1.msra.mxu0 %v190
    %200 = vmatprep.subr.mxu0 0.0
    %201 = vmatpush1.msra.mxu0 %v189
    %202 = vmatprep.subr.mxu0 0.0
    %203 = vmatpush1.msra.mxu0 %v188
    %204 = vmatprep.subr.mxu0 0.0
    %205 = vmatpush1.msra.mxu0 %v187
    %206 = vmatprep.subr.mxu0 0.0
    %207 = vmatpush1.msra.mxu0 %v186
    %208 = vmatprep.subr.mxu0 0.0
    %209 = vmatpush1.msra.mxu0 %v185
    %210 = vmatprep.subr.mxu0 0.0
    %211 = vmatpush1.msra.mxu0 %v184
    %212 = vmatprep.subr.mxu0 0.0
    %213 = vmatpush1.msra.mxu0 %v183
    %214 = vmatprep.subr.mxu0 0.0
    %215 = vmatpush1.msra.mxu0 %v182
    %216 = vmatprep.subr.mxu0 0.0
    %217 = vmatpush1.msra.mxu0 %v181
    %218 = vmatprep.subr.mxu0 0.0
    %219 = vmatpush1.msra.mxu0 %v180
    %220 = vmatprep.subr.mxu0 0.0
    %221 = vmatpush1.msra.mxu0 %v179
    %222 = vmatprep.subr.mxu0 0.0
    %223 = vmatpush1.msra.mxu0 %v178
    %224 = vmatprep.subr.mxu0 0.0
    %225 = vmatpush1.msra.mxu0 %v177
    %226 = vmatprep.subr.mxu0 0.0
    %227 = vmatpush1.msra.mxu0 %v176
    %228 = vmatprep.subr.mxu0 0.0
    %229 = vmatpush1.msra.mxu0 %v175
    %230 = vmatprep.subr.mxu0 0.0
    %231 = vmatpush2.msra.mxu0 0.0
    %232 = vmatprep.subr.mxu0 0.0
    %233 = vmatpush2.msra.mxu0 0.0
    %234 = vmatprep.subr.mxu0 0.0
    %235 = vmatpush2.msra.mxu0 0.0
    %236 = vmatprep.subr.mxu0 0.0
    %237 = vmatpush2.msra.mxu0 0.0
    %238 = vmatprep.subr.mxu0 0.0
    %239 = vmatpush2.msra.mxu0 0.0
    %240 = vmatprep.subr.mxu0 0.0
    %241 = vmatpush2.msra.mxu0 0.0
    %242 = vmatprep.subr.mxu0 0.0
    %243 = vmatpush2.msra.mxu0 0.0
    %244 = vmatprep.subr.mxu0 0.0
    %245 = vmatpush2.msra.mxu0 0.0
    %246 = vmatprep.subr.mxu0 0.0
    %247 = vmatpush2.msra.mxu0 0.0
    %248 = vmatprep.subr.mxu0 0.0
    %249 = vmatpush2.msra.mxu0 0.0
    %250 = vmatprep.subr.mxu0 0.0
    %251 = vmatpush2.msra.mxu0 0.0
    %252 = vmatprep.subr.mxu0 0.0
    %253 = vmatpush2.msra.mxu0 0.0
    %254 = vmatprep.subr.mxu0 0.0
    %255 = vmatpush2.msra.mxu0 0.0
    %256 = vmatprep.subr.mxu0 0.0
    %257 = vmatpush2.msra.mxu0 0.0
    %258 = vmatprep.subr.mxu0 0.0
    %259 = vmatpush2.msra.mxu0 0.0
    %260 = vmatprep.subr.mxu0 0.0
    %261 = vmatpush2.msra.mxu0 0.0
    %262 = vmatprep.mubr.f32.mxu0 0.0
    %263 = vmatmul.mubr.f32.gmra.mxu0 %v174
    %v264 = vpop.f32.mrf.mxu0
    %v265 = vadd.f32 %v196, %v264
    %v266 = vpop.f32.mrf.mxu0
    %267 = vdwg.mxu0
    %v268 = vmax.f32 %v265, 0.0
    %v269 = vadd.f32 %v268, %v80
    %s270 = scalar_lea.vmem [#allocation5], 128
    %v271 = vld [vmem:[%s270] sm:$0xff]
    %v272 = vld [vmem:[%s270 + $0x8] sm:$0xff]
    %v273 = vld [vmem:[%s270 + $0x10] sm:$0xff]
    %v274 = vld [vmem:[%s270 + $0x18] sm:$0xff]
    %v275 = vld [vmem:[%s270 + $0x20] sm:$0xff]
    %v276 = vld [vmem:[%s270 + $0x28] sm:$0xff]
    %v277 = vld [vmem:[%s270 + $0x30] sm:$0xff]
    %v278 = vld [vmem:[%s270 + $0x38] sm:$0xff]
    %v279 = vld [vmem:[%s270 + $0x40] sm:$0xff]
    %v280 = vld [vmem:[%s270 + $0x48] sm:$0xff]
    %v281 = vld [vmem:[%s270 + $0x50] sm:$0xff]
    %v282 = vld [vmem:[%s270 + $0x58] sm:$0xff]
    %v283 = vld [vmem:[%s270 + $0x60] sm:$0xff]
    %v284 = vld [vmem:[%s270 + $0x68] sm:$0xff]
    %v285 = vld [vmem:[%s270 + $0x70] sm:$0xff]
    %v286 = vld [vmem:[%s270 + $0x78] sm:$0xff]
    %s287 = scalar_lea.vmem %s2, 1
    %v288 = vld [vmem:[%s287] sm:$0x1]
    %v290 = vlaneseq
    %v291 = vshrl.u32 %v290, 7
    %v292 = vsub.s32 0, %v291
    %v293 = vrot.slane %v288, %v292
    %295 = vmatprep.subr.mxu0 0.0
    %296 = vmatpush1.msra.mxu0 %v286
    %297 = vmatprep.subr.mxu0 0.0
    %298 = vmatpush1.msra.mxu0 %v285
    %299 = vmatprep.subr.mxu0 0.0
    %300 = vmatpush1.msra.mxu0 %v284
    %301 = vmatprep.subr.mxu0 0.0
    %302 = vmatpush1.msra.mxu0 %v283
    %303 = vmatprep.subr.mxu0 0.0
    %304 = vmatpush1.msra.mxu0 %v282
    %305 = vmatprep.subr.mxu0 0.0
    %306 = vmatpush1.msra.mxu0 %v281
    %307 = vmatprep.subr.mxu0 0.0
    %308 = vmatpush1.msra.mxu0 %v280
    %309 = vmatprep.subr.mxu0 0.0
    %310 = vmatpush1.msra.mxu0 %v279
    %311 = vmatprep.subr.mxu0 0.0
    %312 = vmatpush1.msra.mxu0 %v278
    %313 = vmatprep.subr.mxu0 0.0
    %314 = vmatpush1.msra.mxu0 %v277
    %315 = vmatprep.subr.mxu0 0.0
    %316 = vmatpush1.msra.mxu0 %v276
    %317 = vmatprep.subr.mxu0 0.0
    %318 = vmatpush1.msra.mxu0 %v275
    %319 = vmatprep.subr.mxu0 0.0
    %320 = vmatpush1.msra.mxu0 %v274
    %321 = vmatprep.subr.mxu0 0.0
    %322 = vmatpush1.msra.mxu0 %v273
    %323 = vmatprep.subr.mxu0 0.0
    %324 = vmatpush1.msra.mxu0 %v272
    %325 = vmatprep.subr.mxu0 0.0
    %326 = vmatpush1.msra.mxu0 %v271
    %327 = vmatprep.subr.mxu0 0.0
    %328 = vmatpush2.msra.mxu0 0.0
    %329 = vmatprep.subr.mxu0 0.0
    %330 = vmatpush2.msra.mxu0 0.0
    %331 = vmatprep.subr.mxu0 0.0
    %332 = vmatpush2.msra.mxu0 0.0
    %333 = vmatprep.subr.mxu0 0.0
    %334 = vmatpush2.msra.mxu0 0.0
    %335 = vmatprep.subr.mxu0 0.0
    %336 = vmatpush2.msra.mxu0 0.0
    %337 = vmatprep.subr.mxu0 0.0
    %338 = vmatpush2.msra.mxu0 0.0
    %339 = vmatprep.subr.mxu0 0.0
    %340 = vmatpush2.msra.mxu0 0.0
    %341 = vmatprep.subr.mxu0 0.0
    %342 = vmatpush2.msra.mxu0 0.0
    %343 = vmatprep.subr.mxu0 0.0
    %344 = vmatpush2.msra.mxu0 0.0
    %345 = vmatprep.subr.mxu0 0.0
    %346 = vmatpush2.msra.mxu0 0.0
    %347 = vmatprep.subr.mxu0 0.0
    %348 = vmatpush2.msra.mxu0 0.0
    %349 = vmatprep.subr.mxu0 0.0
    %350 = vmatpush2.msra.mxu0 0.0
    %351 = vmatprep.subr.mxu0 0.0
    %352 = vmatpush2.msra.mxu0 0.0
    %353 = vmatprep.subr.mxu0 0.0
    %354 = vmatpush2.msra.mxu0 0.0
    %355 = vmatprep.subr.mxu0 0.0
    %356 = vmatpush2.msra.mxu0 0.0
    %357 = vmatprep.subr.mxu0 0.0
    %358 = vmatpush2.msra.mxu0 0.0
    %359 = vmatprep.mubr.f32.mxu0 0.0
    %360 = vmatmul.mubr.f32.gmra.mxu0 %v269
    %v361 = vpop.f32.mrf.mxu0
    %v362 = vadd.f32 %v293, %v361
    %v363 = vpop.f32.mrf.mxu0
    %364 = vdwg.mxu0
    %v365 = vmax.f32 %v362, 0.0
    %s366 = scalar_lea.vmem [#allocation7], 128
    %v367 = vld [vmem:[%s366] sm:$0xff]
    %v368 = vld [vmem:[%s366 + $0x8] sm:$0xff]
    %v369 = vld [vmem:[%s366 + $0x10] sm:$0xff]
    %v370 = vld [vmem:[%s366 + $0x18] sm:$0xff]
    %v371 = vld [vmem:[%s366 + $0x20] sm:$0xff]
    %v372 = vld [vmem:[%s366 + $0x28] sm:$0xff]
    %v373 = vld [vmem:[%s366 + $0x30] sm:$0xff]
    %v374 = vld [vmem:[%s366 + $0x38] sm:$0xff]
    %v375 = vld [vmem:[%s366 + $0x40] sm:$0xff]
    %v376 = vld [vmem:[%s366 + $0x48] sm:$0xff]
    %v377 = vld [vmem:[%s366 + $0x50] sm:$0xff]
    %v378 = vld [vmem:[%s366 + $0x58] sm:$0xff]
    %v379 = vld [vmem:[%s366 + $0x60] sm:$0xff]
    %v380 = vld [vmem:[%s366 + $0x68] sm:$0xff]
    %v381 = vld [vmem:[%s366 + $0x70] sm:$0xff]
    %v382 = vld [vmem:[%s366 + $0x78] sm:$0xff]
    %s383 = scalar_lea.vmem %s4, 1
    %v384 = vld [vmem:[%s383] sm:$0x1]
    %v386 = vlaneseq
    %v387 = vshrl.u32 %v386, 7
    %v388 = vsub.s32 0, %v387
    %v389 = vrot.slane %v384, %v388
    %391 = vmatprep.subr.mxu0 0.0
    %392 = vmatpush1.msra.mxu0 %v382
    %393 = vmatprep.subr.mxu0 0.0
    %394 = vmatpush1.msra.mxu0 %v381
    %395 = vmatprep.subr.mxu0 0.0
    %396 = vmatpush1.msra.mxu0 %v380
    %397 = vmatprep.subr.mxu0 0.0
    %398 = vmatpush1.msra.mxu0 %v379
    %399 = vmatprep.subr.mxu0 0.0
    %400 = vmatpush1.msra.mxu0 %v378
    %401 = vmatprep.subr.mxu0 0.0
    %402 = vmatpush1.msra.mxu0 %v377
    %403 = vmatprep.subr.mxu0 0.0
    %404 = vmatpush1.msra.mxu0 %v376
    %405 = vmatprep.subr.mxu0 0.0
    %406 = vmatpush1.msra.mxu0 %v375
    %407 = vmatprep.subr.mxu0 0.0
    %408 = vmatpush1.msra.mxu0 %v374
    %409 = vmatprep.subr.mxu0 0.0
    %410 = vmatpush1.msra.mxu0 %v373
    %411 = vmatprep.subr.mxu0 0.0
    %412 = vmatpush1.msra.mxu0 %v372
    %413 = vmatprep.subr.mxu0 0.0
    %414 = vmatpush1.msra.mxu0 %v371
    %415 = vmatprep.subr.mxu0 0.0
    %416 = vmatpush1.msra.mxu0 %v370
    %417 = vmatprep.subr.mxu0 0.0
    %418 = vmatpush1.msra.mxu0 %v369
    %419 = vmatprep.subr.mxu0 0.0
    %420 = vmatpush1.msra.mxu0 %v368
    %421 = vmatprep.subr.mxu0 0.0
    %422 = vmatpush1.msra.mxu0 %v367
    %423 = vmatprep.subr.mxu0 0.0
    %424 = vmatpush2.msra.mxu0 0.0
    %425 = vmatprep.subr.mxu0 0.0
    %426 = vmatpush2.msra.mxu0 0.0
    %427 = vmatprep.subr.mxu0 0.0
    %428 = vmatpush2.msra.mxu0 0.0
    %429 = vmatprep.subr.mxu0 0.0
    %430 = vmatpush2.msra.mxu0 0.0
    %431 = vmatprep.subr.mxu0 0.0
    %432 = vmatpush2.msra.mxu0 0.0
    %433 = vmatprep.subr.mxu0 0.0
    %434 = vmatpush2.msra.mxu0 0.0
    %435 = vmatprep.subr.mxu0 0.0
    %436 = vmatpush2.msra.mxu0 0.0
    %437 = vmatprep.subr.mxu0 0.0
    %438 = vmatpush2.msra.mxu0 0.0
    %439 = vmatprep.subr.mxu0 0.0
    %440 = vmatpush2.msra.mxu0 0.0
    %441 = vmatprep.subr.mxu0 0.0
    %442 = vmatpush2.msra.mxu0 0.0
    %443 = vmatprep.subr.mxu0 0.0
    %444 = vmatpush2.msra.mxu0 0.0
    %445 = vmatprep.subr.mxu0 0.0
    %446 = vmatpush2.msra.mxu0 0.0
    %447 = vmatprep.subr.mxu0 0.0
    %448 = vmatpush2.msra.mxu0 0.0
    %449 = vmatprep.subr.mxu0 0.0
    %450 = vmatpush2.msra.mxu0 0.0
    %451 = vmatprep.subr.mxu0 0.0
    %452 = vmatpush2.msra.mxu0 0.0
    %453 = vmatprep.subr.mxu0 0.0
    %454 = vmatpush2.msra.mxu0 0.0
    %455 = vmatprep.mubr.f32.mxu0 0.0
    %456 = vmatmul.mubr.f32.gmra.mxu0 %v365
    %v457 = vpop.f32.mrf.mxu0
    %v458 = vadd.f32 %v389, %v457
    %v459 = vpop.f32.mrf.mxu0
    %460 = vdwg.mxu0
    %v461 = vmax.f32 %v458, 0.0
    %v462 = vadd.f32 %v461, %v269
    %v463 = vld [vmem:[#allocation8] sm:$0xff]
    %v464 = vld [vmem:[#allocation8 + $0x8] sm:$0xff]
    %v465 = vld [vmem:[#allocation8 + $0x10] sm:$0xff]
    %v466 = vld [vmem:[#allocation8 + $0x18] sm:$0xff]
    %v467 = vld [vmem:[#allocation8 + $0x20] sm:$0xff]
    %v468 = vld [vmem:[#allocation8 + $0x28] sm:$0xff]
    %v469 = vld [vmem:[#allocation8 + $0x30] sm:$0xff]
    %v470 = vld [vmem:[#allocation8 + $0x38] sm:$0xff]
    %v471 = vld [vmem:[#allocation8 + $0x40] sm:$0xff]
    %v472 = vld [vmem:[#allocation8 + $0x48] sm:$0xff]
    %v473 = vld [vmem:[#allocation8 + $0x50] sm:$0xff]
    %v474 = vld [vmem:[#allocation8 + $0x58] sm:$0xff]
    %v475 = vld [vmem:[#allocation8 + $0x60] sm:$0xff]
    %v476 = vld [vmem:[#allocation8 + $0x68] sm:$0xff]
    %v477 = vld [vmem:[#allocation8 + $0x70] sm:$0xff]
    %v478 = vld [vmem:[#allocation8 + $0x78] sm:$0xff]
    %v479 = vld [vmem:[%s6] sm:$0x1]
    %v481 = vlaneseq
    %v482 = vshrl.u32 %v481, 7
    %v483 = vsub.s32 0, %v482
    %v484 = vrot.slane %v479, %v483
    %486 = vmatprep.subr.mxu0 0.0
    %487 = vmatpush1.msra.mxu0 %v478
    %488 = vmatprep.subr.mxu0 0.0
    %489 = vmatpush1.msra.mxu0 %v477
    %490 = vmatprep.subr.mxu0 0.0
    %491 = vmatpush1.msra.mxu0 %v476
    %492 = vmatprep.subr.mxu0 0.0
    %493 = vmatpush1.msra.mxu0 %v475
    %494 = vmatprep.subr.mxu0 0.0
    %495 = vmatpush1.msra.mxu0 %v474
    %496 = vmatprep.subr.mxu0 0.0
    %497 = vmatpush1.msra.mxu0 %v473
    %498 = vmatprep.subr.mxu0 0.0
    %499 = vmatpush1.msra.mxu0 %v472
    %500 = vmatprep.subr.mxu0 0.0
    %501 = vmatpush1.msra.mxu0 %v471
    %502 = vmatprep.subr.mxu0 0.0
    %503 = vmatpush1.msra.mxu0 %v470
    %504 = vmatprep.subr.mxu0 0.0
    %505 = vmatpush1.msra.mxu0 %v469
    %506 = vmatprep.subr.mxu0 0.0
    %507 = vmatpush1.msra.mxu0 %v468
    %508 = vmatprep.subr.mxu0 0.0
    %509 = vmatpush1.msra.mxu0 %v467
    %510 = vmatprep.subr.mxu0 0.0
    %511 = vmatpush1.msra.mxu0 %v466
    %512 = vmatprep.subr.mxu0 0.0
    %513 = vmatpush1.msra.mxu0 %v465
    %514 = vmatprep.subr.mxu0 0.0
    %515 = vmatpush1.msra.mxu0 %v464
    %516 = vmatprep.subr.mxu0 0.0
    %517 = vmatpush1.msra.mxu0 %v463
    %518 = vmatprep.subr.mxu0 0.0
    %519 = vmatpush2.msra.mxu0 0.0
    %520 = vmatprep.subr.mxu0 0.0
    %521 = vmatpush2.msra.mxu0 0.0
    %522 = vmatprep.subr.mxu0 0.0
    %523 = vmatpush2.msra.mxu0 0.0
    %524 = vmatprep.subr.mxu0 0.0
    %525 = vmatpush2.msra.mxu0 0.0
    %526 = vmatprep.subr.mxu0 0.0
    %527 = vmatpush2.msra.mxu0 0.0
    %528 = vmatprep.subr.mxu0 0.0
    %529 = vmatpush2.msra.mxu0 0.0
    %530 = vmatprep.subr.mxu0 0.0
    %531 = vmatpush2.msra.mxu0 0.0
    %532 = vmatprep.subr.mxu0 0.0
    %533 = vmatpush2.msra.mxu0 0.0
    %534 = vmatprep.subr.mxu0 0.0
    %535 = vmatpush2.msra.mxu0 0.0
    %536 = vmatprep.subr.mxu0 0.0
    %537 = vmatpush2.msra.mxu0 0.0
    %538 = vmatprep.subr.mxu0 0.0
    %539 = vmatpush2.msra.mxu0 0.0
    %540 = vmatprep.subr.mxu0 0.0
    %541 = vmatpush2.msra.mxu0 0.0
    %542 = vmatprep.subr.mxu0 0.0
    %543 = vmatpush2.msra.mxu0 0.0
    %544 = vmatprep.subr.mxu0 0.0
    %545 = vmatpush2.msra.mxu0 0.0
    %546 = vmatprep.subr.mxu0 0.0
    %547 = vmatpush2.msra.mxu0 0.0
    %548 = vmatprep.subr.mxu0 0.0
    %549 = vmatpush2.msra.mxu0 0.0
    %550 = vmatprep.mubr.f32.mxu0 0.0
    %551 = vmatmul.mubr.f32.gmra.mxu0 %v462
    %v552 = vpop.f32.mrf.mxu0
    %v553 = vadd.f32 %v484, %v552
    %v554 = vpop.f32.mrf.mxu0
    %555 = vdwg.mxu0
    %556 = vst [vmem:[#allocation10] sm:$0xff] %v553
    // Predicated region
    $region46: #{tpu_custom_call.1} parent=1 // pred_check
      _
    $region47: #{tpu_custom_call.1} parent=1 // pred_check_branch
      %558 = sbr.rel (0) target = $region49
    $region48: #{tpu_custom_call.1} parent=1 // pred_region
      %s560 = ssub.s32 128, 128
      %561 = vsyncadd [#allocation4], %s560
      %s563 = sshll.u32 [#allocation10], 4
      %s564 = int_to_ptr.vmem [resolvable:$true] %s563
      %566 = dma.vmem_to_hbm [thread:$0]  %s564, 128, %s7, [#allocation4]
    $region49: #{tpu_custom_call.1} parent=1 // pred_fallthru
      _
    // Predicated region
    $region50: #{tpu_custom_call.1} parent=1 // pred_check
      _
    $region51: #{tpu_custom_call.1} parent=1 // pred_check_branch
      %568 = sbr.rel (0) target = $region53
    $region52: #{tpu_custom_call.1} parent=1 // pred_region
      %569 = dma.done [#allocation4], 128
    $region53: #{tpu_custom_call.1} parent=1 // pred_fallthru
      _
    %570 = vsyncpa [#allocation3], 1
    %571 = vsyncpa [#allocation6], 1
    %572 = vsyncpa [#allocation9], 1
    %573 = vsyncpa [#allocation4], 1

</llo_original>
